<compile_context>
chip_gen: v5e
topology: v5e:2x2
jax: 0.10.0
libtpu: 0.0.40
codegen_flags: <defaults>
</compile_context>

<pallas_src>
from types import SimpleNamespace

import numpy as np
import jax
import jax.numpy as jnp
from jax.experimental import pallas as pl
from jax.experimental.pallas import tpu as pltpu

EPS = 1e-5          # BatchNorm1d default eps
NEG_SLOPE = 0.01    # nn.LeakyReLU default
LANES = 128         # lane-dense feature width carried through the whole chain


def _round_up(n, m):
    return ((n + m - 1) // m) * m


# ----------------------- parameter folding (load-time, params only) ----------

def _fold_conv(w, bias, bn, stride, pad, L_in):
    """Fold BN(affine, running stats) -> zero-pad -> Conv1d into  y = h @ M + b,
    acting on the channels-last flattened activation (index l*C + c).
    Exact algebraic rewrite; touches parameters only (no activation FLOPs)."""
    C_out, C_in, K = w.shape
    L_out = (L_in + 2 * pad - K) // stride + 1
    gamma, beta, mean, var = bn
    scale = gamma / jnp.sqrt(var + EPS)                      # (C_in,)
    shift = beta - mean * scale                              # (C_in,)
    w_kic = jnp.transpose(w, (2, 1, 0))                      # (K, C_in, C_out)

    # Static tap positions / validity.  Zero padding is applied AFTER the BN,
    # so out-of-range taps contribute nothing (neither scale nor shift).
    li = np.arange(L_out)[:, None] * stride + np.arange(K)[None, :] - pad
    valid = (li >= 0) & (li < L_in)                          # (L_out, K)
    sel = np.zeros((L_out, K, L_in), np.float32)
    lo_i, k_i = np.nonzero(valid)
    sel[lo_i, k_i, li[lo_i, k_i]] = 1.0

    # M[l_in*C_in + c_in, l_out*C_out + c_out]
    M = jnp.einsum('okl,kic->lioc', jnp.asarray(sel),
                   w_kic * scale[None, :, None])
    M = M.reshape(L_in * C_in, L_out * C_out)
    b_row = jnp.einsum('ok,kic->oc', jnp.asarray(valid, np.float32),
                       w_kic * shift[None, :, None])         # (L_out, C_out)
    if bias is not None:
        b_row = b_row + bias[None, :]
    return M, b_row.reshape(-1), L_out


def _pad_mat(m):
    # TODO(synk): widths > 128 need a K-tiled (or HBM-resident, pl.ANY) variant;
    # the dense fold is O(L^2*C^2) and would also blow v7x's 64 MiB VMEM.
    assert m.shape[0] <= LANES and m.shape[1] <= LANES, m.shape
    return jnp.pad(m, ((0, LANES - m.shape[0]), (0, LANES - m.shape[1])))


def _pad_vec(v):
    assert v.shape[0] <= LANES
    return jnp.pad(v, (0, LANES - v.shape[0]))


def fold_params(params, cfg, L_in):
    """Runs ONCE at model-load time (hoisted out of the per-call jit).
    Packs all folded layer/skip weights into one (n_blk,128,128) bf16 slab,
    biases into one (n_blk,128) f32 slab, and the whole head
    (BN + flatten + freq-BN + concat + FC) into a single matrix + bias row."""
    m = cfg.model
    n_layer, skip_cnt = m.conv_layer, m.skip_cnt
    mats, biases, smats, sbiases = [], [], [], []

    L, Ls = L_in, L_in
    skip_idx, skip_start = 0, 0
    for i in range(n_layer):
        K, s = m.conv_kernel[i], m.conv_stride[i]
        pad = (K - 1) // 2
        M, b, L = _fold_conv(params['conv_w'][i], None, params['bn'][i], s, pad, L)
        mats.append(_pad_mat(M))
        biases.append(_pad_vec(b))
        if i % skip_cnt == skip_cnt - 1:
            sp = params['skip'][skip_idx]
            Ks = m.conv_kernel[skip_start]
            ss = 1
            for j in range(skip_start, i + 1):
                ss *= m.conv_stride[j]
            Ms, bs, Lso = _fold_conv(sp['w'], sp['b'], sp['bn'], ss, (Ks - 1) // 2, Ls)
            assert Lso == L and sp['w'].shape[0] == m.conv_ch[i + 1]
            smats.append(_pad_mat(Ms))
            sbiases.append(_pad_vec(bs))
            Ls = L
            skip_idx += 1
            skip_start = i + 1

    w_slab = jnp.stack(mats + smats).astype(jnp.bfloat16)    # (n_blk, 128, 128)
    b_slab = jnp.stack(biases + sbiases)                     # (n_blk, 128) f32

    # ---- head: BN (+ freq BN) + flatten + concat + FC -> single matmul ------
    Co, Lo = m.conv_ch[-1], L
    assert Lo * Co <= LANES
    N = m.n_class
    gamma, beta, mean, var = params['norm']
    s_c = gamma / jnp.sqrt(var + EPS)
    b_c = beta - mean * s_c
    fc_w, fc_b = params['fc_w'], params['fc_b']               # (N, fc_in), (N,)
    wx = fc_w[:, :Co * Lo].reshape(N, Co, Lo)                 # cols ordered c*Lo + l
    Wx = jnp.transpose(wx, (2, 1, 0)).reshape(Lo * Co, N)     # rows ordered l*Co + c
    scale_cl = jnp.tile(s_c, Lo)                              # index l*Co+c -> s_c[c]
    shift_cl = jnp.tile(b_c, Lo)
    b_head = fc_b + shift_cl @ Wx
    Wx_p = _pad_mat(Wx * scale_cl[:, None])                   # (128, 128)
    if m.use_spec:
        Ff = m.n_spec_freq
        assert Ff <= LANES
        fg, fb, fm, fv = params['freq_norm']
        f_s = fg / jnp.sqrt(fv + EPS)
        f_b = fb - fm * f_s
        Wf = fc_w[:, Co * Lo:].T                              # (Ff, N)
        b_head = b_head + f_b @ Wf
        Wf_p = _pad_mat(Wf * f_s[:, None])                    # (128, 128)
        w_head = jnp.concatenate([Wx_p, Wf_p], axis=0)        # (256, 128)
    else:
        w_head = Wx_p                                         # (128, 128)

    return {
        'w': w_slab,                                          # (n_blk,128,128) bf16
        'b': b_slab,                                          # (n_blk,128)     f32
        'wh': w_head.astype(jnp.bfloat16),                    # (K_head,128)    bf16
        'bh': _pad_vec(b_head).reshape(1, LANES),             # (1,128)         f32
    }


# ------------------------------ fused Pallas kernel ---------------------------

def _make_kernel(n_layer, skip_cnt, n_skip, use_spec):
    """Whole-network kernel for one batch tile: chain of (TB,128)@(128,128)
    matmuls, LeakyReLUs and skip adds with all activations in VMEM/vregs; the
    head is a single fused matmul on [h | freq]."""

    def kernel(*refs):
        if use_spec:
            x_ref, f_ref, w_ref, b_ref, wh_ref, bh_ref, out_ref = refs
        else:
            x_ref, w_ref, b_ref, wh_ref, bh_ref, out_ref = refs
            f_ref = None

        def mm(a, w):
            # bf16 MXU inputs, f32 accumulation.
            return jnp.dot(a.astype(jnp.bfloat16), w,
                           preferred_element_type=jnp.float32)

        def lrelu(v):
            return jnp.maximum(v, NEG_SLOPE * v)   # vmul+vmax (no vcmp/vsel)

        h = x_ref[...]
        h_skip = h
        sj = 0
        skip_pre = None
        for i in range(n_layer):                   # static unroll
            if i % skip_cnt == 0 and sj < n_skip:
                # Issue the skip-path matmul as soon as its input exists so its
                # MXU latency hides under the following main-path layers.
                skip_pre = (mm(h_skip, w_ref[n_layer + sj])
                            + b_ref[n_layer + sj:n_layer + sj + 1, :])
            h = lrelu(mm(h, w_ref[i]) + b_ref[i:i + 1, :])
            if i % skip_cnt == skip_cnt - 1:
                h = h + lrelu(skip_pre)
                h_skip = h
                sj += 1

        # Fused head: one MXU push/drain for [h | freq] @ W_head + b.
        h = h.astype(jnp.bfloat16)
        if use_spec:
            h = jnp.concatenate([h, f_ref[...]], axis=1)      # (TB, 256)
        out_ref[...] = jnp.dot(h, wh_ref[...],
                               preferred_element_type=jnp.float32) + bh_ref[...]

    return kernel


# ------------------------------------ forward ---------------------------------

def utsn_forward(folded, cfg, x, freq):
    m = cfg.model
    B = x.shape[0]
    n_layer, skip_cnt = m.conv_layer, m.skip_cnt
    n_skip = n_layer // skip_cnt

    # channels-last flatten (index l*C + c), bf16, lane-padded to 128
    x_cl = jnp.transpose(x, (0, 2, 1)).reshape(B, -1).astype(jnp.bfloat16)
    w_in = x_cl.shape[1]

    TB = min(128, _round_up(B, 16))          # batch tile (bf16 sublane multiple)
    B_pad = _round_up(B, TB)
    x_p = jnp.zeros((B_pad, LANES), jnp.bfloat16).at[:B, :w_in].set(x_cl)

    operands = [x_p]
    in_specs = [pl.BlockSpec((TB, LANES), lambda i: (i, 0))]
    if m.use_spec:
        f_cl = freq.reshape(B, -1).astype(jnp.bfloat16)
        f_p = jnp.zeros((B_pad, LANES), jnp.bfloat16).at[:B, :f_cl.shape[1]].set(f_cl)
        operands.append(f_p)
        in_specs.append(pl.BlockSpec((TB, LANES), lambda i: (i, 0)))

    w_slab, b_slab, w_head, b_head = folded['w'], folded['b'], folded['wh'], folded['bh']
    operands += [w_slab, b_slab, w_head, b_head]
    in_specs += [
        pl.BlockSpec(w_slab.shape, lambda i: (0, 0, 0)),   # weights stay VMEM-resident
        pl.BlockSpec(b_slab.shape, lambda i: (0, 0)),
        pl.BlockSpec(w_head.shape, lambda i: (0, 0)),
        pl.BlockSpec(b_head.shape, lambda i: (0, 0)),
    ]

    kernel = _make_kernel(n_layer, skip_cnt, n_skip, m.use_spec)
    out = pl.pallas_call(
        kernel,
        grid=(B_pad // TB,),
        in_specs=in_specs,
        out_specs=pl.BlockSpec((TB, LANES), lambda i: (i, 0)),
        out_shape=jax.ShapeDtypeStruct((B_pad, LANES), jnp.float32),
        compiler_params=pltpu.CompilerParams(
            dimension_semantics=("parallel",)),   # megacore split on v7x
    )(*operands)
    return out[:B, :m.n_class]


# --------------------- deterministic parameter init --------------------------

def init_params(key, cfg):
    m = cfg.model
    keys = iter(jax.random.split(key, 64))

    def bn_params(n):
        return (1.0 + 0.1 * jax.random.normal(next(keys), (n,), jnp.float32),  # gamma
                0.1 * jax.random.normal(next(keys), (n,), jnp.float32),        # beta
                0.1 * jax.random.normal(next(keys), (n,), jnp.float32),        # running mean
                0.5 + jax.random.uniform(next(keys), (n,), jnp.float32))       # running var

    params = {'conv_w': [], 'bn': [], 'skip': []}
    skip_start = 0
    for i in range(m.conv_layer):
        n_in, n_out, K = m.conv_ch[i], m.conv_ch[i + 1], m.conv_kernel[i]
        params['conv_w'].append(
            0.2 * jax.random.normal(next(keys), (n_out, n_in, K), jnp.float32))
        params['bn'].append(bn_params(n_in))
        if i % m.skip_cnt == m.skip_cnt - 1:
            skip_end = i + 1
            Ks = m.conv_kernel[skip_start]
            cin, cout = m.conv_ch[skip_start], m.conv_ch[skip_end - 1]
            params['skip'].append({
                'w': 0.2 * jax.random.normal(next(keys), (cout, cin, Ks), jnp.float32),
                'b': 0.1 * jax.random.normal(next(keys), (cout,), jnp.float32),
                'bn': bn_params(cin),
            })
            skip_start = skip_end

    out_ch = m.conv_ch[-1]
    params['norm'] = bn_params(out_ch)
    params['freq_norm'] = bn_params(m.n_spec_freq)
    fc_in = (m.n_spec_freq if m.use_spec else 0) + m.out_dim * out_ch
    params['fc_w'] = 0.1 * jax.random.normal(next(keys), (m.n_class, fc_in), jnp.float32)
    params['fc_b'] = 0.1 * jax.random.normal(next(keys), (m.n_class,), jnp.float32)
    return params


# ------------------------- pure-JAX reference ---------------------------------

def _bn(x, p):
    gamma, beta, mean, var = p
    s = gamma / jnp.sqrt(var + EPS)
    b = beta - mean * s
    if x.ndim == 3:
        return x * s[None, :, None] + b[None, :, None]
    return x * s[None, :] + b[None, :]


def _conv1d(x, w, b, stride, pad):
    out = jax.lax.conv_general_dilated(
        x, w, window_strides=(stride,), padding=[(pad, pad)],
        dimension_numbers=('NCH', 'OIH', 'NCH'),
        precision=jax.lax.Precision.HIGHEST)
    if b is not None:
        out = out + b[None, :, None]
    return out


def _lrelu(x):
    return jnp.where(x > 0, x, NEG_SLOPE * x)


def utsn_reference(params, cfg, x, freq):
    m = cfg.model
    x_skip = x
    skip_idx, skip_start = 0, 0
    for i in range(m.conv_layer):
        K, s = m.conv_kernel[i], m.conv_stride[i]
        pad = (K - 1) // 2
        x = _lrelu(_conv1d(_bn(x, params['bn'][i]), params['conv_w'][i], None, s, pad))
        if i % m.skip_cnt == m.skip_cnt - 1:
            sp = params['skip'][skip_idx]
            Ks = m.conv_kernel[skip_start]
            ss = 1
            for j in range(skip_start, i + 1):
                ss *= m.conv_stride[j]
            pads = (Ks - 1) // 2
            xs = _lrelu(_conv1d(_bn(x_skip, sp['bn']), sp['w'], sp['b'], ss, pads))
            x = x + xs
            x_skip = x
            skip_idx += 1
            skip_start = i + 1
    x = _bn(x, params['norm'])
    x = x.reshape(x.shape[0], -1)
    if m.use_spec:
        f = _bn(freq.reshape(freq.shape[0], -1), params['freq_norm'])
        x = jnp.concatenate([x, f], axis=1)
    return x @ params['fc_w'].T + params['fc_b'][None, :]


# --------------------------------- main ---------------------------------------

if __name__ == "__main__":
    cfg = SimpleNamespace(model=SimpleNamespace(
        skip_cnt=2,
        conv_layer=4,
        conv_ch=[4, 8, 8, 16, 16],
        conv_kernel=[3, 3, 3, 3],
        conv_stride=[2, 1, 2, 1],
        dropout=0.1,
        fc_drop=0.1,
        use_spec=True,
        n_spec_freq=8,
        out_dim=4,        # = L after the conv stack (16 / (2*1*2*1))
        n_class=5,
    ))

    key = jax.random.PRNGKey(0)
    kx, kf, kp = jax.random.split(key, 3)
    B, L = 2, 16
    x = jax.random.normal(kx, (B, cfg.model.conv_ch[0], L), dtype=jnp.float32)
    freq = jax.random.normal(kf, (B, cfg.model.n_spec_freq), dtype=jnp.float32)
    params = init_params(kp, cfg)

    # Parameter folding hoisted out of the per-call jit: runs once at load time.
    folded = fold_params(params, cfg, L)

    fwd = jax.jit(lambda f, xx, ff: utsn_forward(f, cfg, xx, ff))
    out = jax.block_until_ready(fwd(folded, x, freq))

    ref = utsn_reference(params, cfg, x, freq)
    assert out.shape == (B, cfg.model.n_class), out.shape
    # bf16 MXU inputs (f32 accumulation) across the fused matmul chain ->
    # quantization-aware tolerance; an algebra bug would show as O(0.1-1) error.
    if not jnp.allclose(out, ref, rtol=5e-2, atol=5e-2):
        raise AssertionError(
            f"kernel/reference mismatch, max |err| = {jnp.max(jnp.abs(out - ref))}")
    print("KERNEL_OK")
</pallas_src>

<mosaic_0001>
module attributes {stable_mosaic.version = 11 : i64} {
  func.func @kernel(%arg0: i32, %arg1: memref<16x128xbf16, #tpu.memory_space<vmem>>, %arg2: memref<16x128xbf16, #tpu.memory_space<vmem>>, %arg3: memref<6x128x128xbf16, #tpu.memory_space<vmem>>, %arg4: memref<6x128xf32, #tpu.memory_space<vmem>>, %arg5: memref<256x128xbf16, #tpu.memory_space<vmem>>, %arg6: memref<1x128xf32, #tpu.memory_space<vmem>>, %arg7: memref<16x128xf32, #tpu.memory_space<vmem>>) attributes {dimension_semantics = [#tpu.dimension_semantics<parallel>], iteration_bounds = array<i64: 1>, scalar_prefetch = 0 : i64, scratch_operands = 0 : i64, tpu.core_type = #tpu.core_type<tc>, window_params = [{transform_indices = @transform_0, window_bounds = array<i64: 16, 128>}, {transform_indices = @transform_1, window_bounds = array<i64: 16, 128>}, {pipeline_mode = #tpu.pipeline_mode<synchronous>, transform_indices = @transform_2, window_bounds = array<i64: 6, 128, 128>}, {pipeline_mode = #tpu.pipeline_mode<synchronous>, transform_indices = @transform_3, window_bounds = array<i64: 6, 128>}, {pipeline_mode = #tpu.pipeline_mode<synchronous>, transform_indices = @transform_4, window_bounds = array<i64: 256, 128>}, {pipeline_mode = #tpu.pipeline_mode<synchronous>, transform_indices = @transform_5, window_bounds = array<i64: 1, 128>}, {transform_indices = @transform_6, window_bounds = array<i64: 16, 128>}]} {
    %c0 = arith.constant 0 : index
    %c0_0 = arith.constant 0 : index
    %0 = vector.load %arg1[%c0, %c0_0] : memref<16x128xbf16, #tpu.memory_space<vmem>>, vector<16x128xbf16>
    %c4 = arith.constant 4 : index
    %c0_1 = arith.constant 0 : index
    %c0_2 = arith.constant 0 : index
    %1 = vector.load %arg3[%c4, %c0_1, %c0_2] : memref<6x128x128xbf16, #tpu.memory_space<vmem>>, vector<1x128x128xbf16>
    %2 = vector.shape_cast %1 : vector<1x128x128xbf16> to vector<128x128xbf16>
    %cst = arith.constant dense<0.000000e+00> : vector<16x128xf32>
    %3 = tpu.matmul %0, %2, %cst {dimension_numbers = #tpu.dot_dimension_numbers<[1], [0], [0], [1], [0, 0, 1, 1], [], []>} : vector<16x128xbf16>, vector<128x128xbf16>, vector<16x128xf32> -> vector<16x128xf32>
    %c4_3 = arith.constant 4 : index
    %c0_4 = arith.constant 0 : index
    %4 = vector.load %arg4[%c4_3, %c0_4] : memref<6x128xf32, #tpu.memory_space<vmem>>, vector<1x128xf32>
    %5 = vector.broadcast %4 : vector<1x128xf32> to vector<16x128xf32>
    %6 = arith.addf %3, %5 : vector<16x128xf32>
    %c0_5 = arith.constant 0 : index
    %c0_6 = arith.constant 0 : index
    %c0_7 = arith.constant 0 : index
    %7 = vector.load %arg3[%c0_5, %c0_6, %c0_7] : memref<6x128x128xbf16, #tpu.memory_space<vmem>>, vector<1x128x128xbf16>
    %8 = vector.shape_cast %7 : vector<1x128x128xbf16> to vector<128x128xbf16>
    %cst_8 = arith.constant dense<0.000000e+00> : vector<16x128xf32>
    %9 = tpu.matmul %0, %8, %cst_8 {dimension_numbers = #tpu.dot_dimension_numbers<[1], [0], [0], [1], [0, 0, 1, 1], [], []>} : vector<16x128xbf16>, vector<128x128xbf16>, vector<16x128xf32> -> vector<16x128xf32>
    %c0_9 = arith.constant 0 : index
    %c0_10 = arith.constant 0 : index
    %10 = vector.load %arg4[%c0_9, %c0_10] : memref<6x128xf32, #tpu.memory_space<vmem>>, vector<1x128xf32>
    %11 = vector.broadcast %10 : vector<1x128xf32> to vector<16x128xf32>
    %12 = arith.addf %9, %11 : vector<16x128xf32>
    %cst_11 = arith.constant 0.00999999977 : f32
    %13 = vector.broadcast %cst_11 : f32 to vector<16x128xf32>
    %14 = arith.mulf %13, %12 : vector<16x128xf32>
    %15 = arith.maximumf %12, %14 : vector<16x128xf32>
    %c1 = arith.constant 1 : index
    %c0_12 = arith.constant 0 : index
    %c0_13 = arith.constant 0 : index
    %16 = vector.load %arg3[%c1, %c0_12, %c0_13] : memref<6x128x128xbf16, #tpu.memory_space<vmem>>, vector<1x128x128xbf16>
    %17 = vector.shape_cast %16 : vector<1x128x128xbf16> to vector<128x128xbf16>
    %18 = arith.truncf %15 : vector<16x128xf32> to vector<16x128xbf16>
    %cst_14 = arith.constant dense<0.000000e+00> : vector<16x128xf32>
    %19 = tpu.matmul %18, %17, %cst_14 {dimension_numbers = #tpu.dot_dimension_numbers<[1], [0], [0], [1], [0, 0, 1, 1], [], []>} : vector<16x128xbf16>, vector<128x128xbf16>, vector<16x128xf32> -> vector<16x128xf32>
    %c1_15 = arith.constant 1 : index
    %c0_16 = arith.constant 0 : index
    %20 = vector.load %arg4[%c1_15, %c0_16] : memref<6x128xf32, #tpu.memory_space<vmem>>, vector<1x128xf32>
    %21 = vector.broadcast %20 : vector<1x128xf32> to vector<16x128xf32>
    %22 = arith.addf %19, %21 : vector<16x128xf32>
    %cst_17 = arith.constant 0.00999999977 : f32
    %23 = vector.broadcast %cst_17 : f32 to vector<16x128xf32>
    %24 = arith.mulf %23, %22 : vector<16x128xf32>
    %25 = arith.maximumf %22, %24 : vector<16x128xf32>
    %cst_18 = arith.constant 0.00999999977 : f32
    %26 = vector.broadcast %cst_18 : f32 to vector<16x128xf32>
    %27 = arith.mulf %26, %6 : vector<16x128xf32>
    %28 = arith.maximumf %6, %27 : vector<16x128xf32>
    %29 = arith.addf %25, %28 : vector<16x128xf32>
    %c5 = arith.constant 5 : index
    %c0_19 = arith.constant 0 : index
    %c0_20 = arith.constant 0 : index
    %30 = vector.load %arg3[%c5, %c0_19, %c0_20] : memref<6x128x128xbf16, #tpu.memory_space<vmem>>, vector<1x128x128xbf16>
    %31 = vector.shape_cast %30 : vector<1x128x128xbf16> to vector<128x128xbf16>
    %32 = arith.truncf %29 : vector<16x128xf32> to vector<16x128xbf16>
    %cst_21 = arith.constant dense<0.000000e+00> : vector<16x128xf32>
    %33 = tpu.matmul %32, %31, %cst_21 {dimension_numbers = #tpu.dot_dimension_numbers<[1], [0], [0], [1], [0, 0, 1, 1], [], []>} : vector<16x128xbf16>, vector<128x128xbf16>, vector<16x128xf32> -> vector<16x128xf32>
    %c5_22 = arith.constant 5 : index
    %c0_23 = arith.constant 0 : index
    %34 = vector.load %arg4[%c5_22, %c0_23] : memref<6x128xf32, #tpu.memory_space<vmem>>, vector<1x128xf32>
    %35 = vector.broadcast %34 : vector<1x128xf32> to vector<16x128xf32>
    %36 = arith.addf %33, %35 : vector<16x128xf32>
    %c2 = arith.constant 2 : index
    %c0_24 = arith.constant 0 : index
    %c0_25 = arith.constant 0 : index
    %37 = vector.load %arg3[%c2, %c0_24, %c0_25] : memref<6x128x128xbf16, #tpu.memory_space<vmem>>, vector<1x128x128xbf16>
    %38 = vector.shape_cast %37 : vector<1x128x128xbf16> to vector<128x128xbf16>
    %39 = arith.truncf %29 : vector<16x128xf32> to vector<16x128xbf16>
    %cst_26 = arith.constant dense<0.000000e+00> : vector<16x128xf32>
    %40 = tpu.matmul %39, %38, %cst_26 {dimension_numbers = #tpu.dot_dimension_numbers<[1], [0], [0], [1], [0, 0, 1, 1], [], []>} : vector<16x128xbf16>, vector<128x128xbf16>, vector<16x128xf32> -> vector<16x128xf32>
    %c2_27 = arith.constant 2 : index
    %c0_28 = arith.constant 0 : index
    %41 = vector.load %arg4[%c2_27, %c0_28] : memref<6x128xf32, #tpu.memory_space<vmem>>, vector<1x128xf32>
    %42 = vector.broadcast %41 : vector<1x128xf32> to vector<16x128xf32>
    %43 = arith.addf %40, %42 : vector<16x128xf32>
    %cst_29 = arith.constant 0.00999999977 : f32
    %44 = vector.broadcast %cst_29 : f32 to vector<16x128xf32>
    %45 = arith.mulf %44, %43 : vector<16x128xf32>
    %46 = arith.maximumf %43, %45 : vector<16x128xf32>
    %c3 = arith.constant 3 : index
    %c0_30 = arith.constant 0 : index
    %c0_31 = arith.constant 0 : index
    %47 = vector.load %arg3[%c3, %c0_30, %c0_31] : memref<6x128x128xbf16, #tpu.memory_space<vmem>>, vector<1x128x128xbf16>
    %48 = vector.shape_cast %47 : vector<1x128x128xbf16> to vector<128x128xbf16>
    %49 = arith.truncf %46 : vector<16x128xf32> to vector<16x128xbf16>
    %cst_32 = arith.constant dense<0.000000e+00> : vector<16x128xf32>
    %50 = tpu.matmul %49, %48, %cst_32 {dimension_numbers = #tpu.dot_dimension_numbers<[1], [0], [0], [1], [0, 0, 1, 1], [], []>} : vector<16x128xbf16>, vector<128x128xbf16>, vector<16x128xf32> -> vector<16x128xf32>
    %c3_33 = arith.constant 3 : index
    %c0_34 = arith.constant 0 : index
    %51 = vector.load %arg4[%c3_33, %c0_34] : memref<6x128xf32, #tpu.memory_space<vmem>>, vector<1x128xf32>
    %52 = vector.broadcast %51 : vector<1x128xf32> to vector<16x128xf32>
    %53 = arith.addf %50, %52 : vector<16x128xf32>
    %cst_35 = arith.constant 0.00999999977 : f32
    %54 = vector.broadcast %cst_35 : f32 to vector<16x128xf32>
    %55 = arith.mulf %54, %53 : vector<16x128xf32>
    %56 = arith.maximumf %53, %55 : vector<16x128xf32>
    %cst_36 = arith.constant 0.00999999977 : f32
    %57 = vector.broadcast %cst_36 : f32 to vector<16x128xf32>
    %58 = arith.mulf %57, %36 : vector<16x128xf32>
    %59 = arith.maximumf %36, %58 : vector<16x128xf32>
    %60 = arith.addf %56, %59 : vector<16x128xf32>
    %61 = arith.truncf %60 : vector<16x128xf32> to vector<16x128xbf16>
    %c0_37 = arith.constant 0 : index
    %c0_38 = arith.constant 0 : index
    %62 = vector.load %arg2[%c0_37, %c0_38] : memref<16x128xbf16, #tpu.memory_space<vmem>>, vector<16x128xbf16>
    %63 = tpu.concatenate %61, %62 in 1 : vector<16x128xbf16>, vector<16x128xbf16> -> vector<16x256xbf16>
    %c0_39 = arith.constant 0 : index
    %c0_40 = arith.constant 0 : index
    %64 = vector.load %arg5[%c0_39, %c0_40] : memref<256x128xbf16, #tpu.memory_space<vmem>>, vector<256x128xbf16>
    %cst_41 = arith.constant dense<0.000000e+00> : vector<16x128xf32>
    %65 = tpu.matmul %63, %64, %cst_41 {dimension_numbers = #tpu.dot_dimension_numbers<[1], [0], [0], [1], [0, 0, 1, 1], [], []>} : vector<16x256xbf16>, vector<256x128xbf16>, vector<16x128xf32> -> vector<16x128xf32>
    %c0_42 = arith.constant 0 : index
    %c0_43 = arith.constant 0 : index
    %66 = vector.load %arg6[%c0_42, %c0_43] : memref<1x128xf32, #tpu.memory_space<vmem>>, vector<1x128xf32>
    %67 = vector.broadcast %66 : vector<1x128xf32> to vector<16x128xf32>
    %68 = arith.addf %65, %67 : vector<16x128xf32>
    %c0_44 = arith.constant 0 : index
    %c0_45 = arith.constant 0 : index
    %69 = vector.load %arg7[%c0_44, %c0_45] : memref<16x128xf32, #tpu.memory_space<vmem>>, vector<16x128xf32>
    tpu.vector_store %arg7[%c0_44, %c0_45], %68 {strides = array<i32>} : memref<16x128xf32, #tpu.memory_space<vmem>>, vector<16x128xf32>,
    return
  }
  func.func @transform_0(%arg0: i32) -> (i32, i32) {
    %c0_i32 = arith.constant 0 : i32
    %c0_i32_0 = arith.constant 0 : i32
    return %arg0, %c0_i32 : i32, i32
  }
  func.func @transform_1(%arg0: i32) -> (i32, i32) {
    %c0_i32 = arith.constant 0 : i32
    %c0_i32_0 = arith.constant 0 : i32
    return %arg0, %c0_i32 : i32, i32
  }
  func.func @transform_2(%arg0: i32) -> (i32, i32, i32) {
    %c0_i32 = arith.constant 0 : i32
    %c0_i32_0 = arith.constant 0 : i32
    %c0_i32_1 = arith.constant 0 : i32
    %c0_i32_2 = arith.constant 0 : i32
    return %c0_i32, %c0_i32_0, %c0_i32_1 : i32, i32, i32
  }
  func.func @transform_3(%arg0: i32) -> (i32, i32) {
    %c0_i32 = arith.constant 0 : i32
    %c0_i32_0 = arith.constant 0 : i32
    %c0_i32_1 = arith.constant 0 : i32
    return %c0_i32, %c0_i32_0 : i32, i32
  }
  func.func @transform_4(%arg0: i32) -> (i32, i32) {
    %c0_i32 = arith.constant 0 : i32
    %c0_i32_0 = arith.constant 0 : i32
    %c0_i32_1 = arith.constant 0 : i32
    return %c0_i32, %c0_i32_0 : i32, i32
  }
  func.func @transform_5(%arg0: i32) -> (i32, i32) {
    %c0_i32 = arith.constant 0 : i32
    %c0_i32_0 = arith.constant 0 : i32
    %c0_i32_1 = arith.constant 0 : i32
    return %c0_i32, %c0_i32_0 : i32, i32
  }
  func.func @transform_6(%arg0: i32) -> (i32, i32) {
    %c0_i32 = arith.constant 0 : i32
    %c0_i32_0 = arith.constant 0 : i32
    return %arg0, %c0_i32 : i32, i32
  }
}

</mosaic_0001>

<llo_original>
// kernel: _lambda_.1
$region0: #{_lambda_.1}
  #allocation0 [shape = 'u32[]', space=smem, size = 0x4, offset = 0x4, fixed_abs, tag = 'smem constant byte address 0x4 - core index']
  #allocation1 [shape = 'u32[72,128]{1,0:T(1,128)}', space=vmem, size = 0x9000, scoped, tag = 'internal scratch']
  %s0 = inlined_call_operand.vmem [shape: bf16[16,128], index: 0, kind: input, shape index: {}]
  %s1 = inlined_call_operand.vmem [shape: bf16[16,128], index: 1, kind: input, shape index: {}]
  %s2 = inlined_call_operand.hbm [shape: bf16[6,128,128], index: 2, kind: input, shape index: {}]
  %s3 = inlined_call_operand.vmem [shape: f32[6,128], index: 3, kind: input, shape index: {}]
  %s4 = inlined_call_operand.hbm [shape: bf16[256,128], index: 4, kind: input, shape index: {}]
  %s5 = inlined_call_operand.vmem [shape: f32[1,128], index: 5, kind: input, shape index: {}]
  %s6 = inlined_call_operand.vmem [shape: f32[16,128], index: 6, kind: output, shape index: {}]
  %s7 = sld [smem:[#allocation0]]
  $region42: #{_lambda_.1} parent=0
    _
  %s9 = ssub.s32 1, %s7
  %s10 = scalar_select 0, %s9, %s7
  $region1: #{_lambda_.1} parent=0
    #allocation2 [shape = 'u8[196608]{0}', space=vmem, size = 0x30000, scoped, tag = 'input window, operand 2, single buffered']
    #allocation3 [shape = 's32[1]{0}', space=sflag, size = 0x4, scoped, tag = 'scoped memory for _lambda_.1']
    #allocation4 [shape = 'u8[65536]{0}', space=vmem, size = 0x10000, scoped, tag = 'input window, operand 4, single buffered']
    #allocation5 [shape = 's32[1]{0}', space=sflag, size = 0x4, scoped, tag = 'scoped memory for _lambda_.1']
    %11 = vsyncpa [#allocation3], 0
    %12 = vsyncpa [#allocation5], 0
    // Predicated region
    $region2: #{_lambda_.1} parent=1 // pred_check
      _
    $region3: #{_lambda_.1} parent=1 // pred_check_branch
      %14 = sbr.rel (0) target = $region5
    $region4: #{_lambda_.1} parent=1 // pred_region
      _
    $region5: #{_lambda_.1} parent=1 // pred_fallthru
      _
    // Predicated region
    $region6: #{_lambda_.1} parent=1 // pred_check
      _
    $region7: #{_lambda_.1} parent=1 // pred_check_branch
      %16 = sbr.rel (0) target = $region9
    $region8: #{_lambda_.1} parent=1 // pred_region
      _
    $region9: #{_lambda_.1} parent=1 // pred_fallthru
      _
    // Predicated region
    $region10: #{_lambda_.1} parent=1 // pred_check
      _
    $region11: #{_lambda_.1} parent=1 // pred_check_branch
      %18 = sbr.rel (0) target = $region13
    $region12: #{_lambda_.1} parent=1 // pred_region
      %20 = vsyncadd [#allocation3], 0
      %s21 = sshll.u32 %s2, 4
      %s22 = int_to_ptr.hbm [resolvable:$true] %s21
      %s23 = sshll.u32 [#allocation2], 4
      %s24 = int_to_ptr.vmem [resolvable:$true] %s23
      %29 = dma.hbm_to_vmem [thread:$0]  %s22, 6144, %s24, [#allocation3], 64, 64, 4
    $region13: #{_lambda_.1} parent=1 // pred_fallthru
      _
    // Predicated region
    $region14: #{_lambda_.1} parent=1 // pred_check
      _
    $region15: #{_lambda_.1} parent=1 // pred_check_branch
      %31 = sbr.rel (0) target = $region17
    $region16: #{_lambda_.1} parent=1 // pred_region
      _
    $region17: #{_lambda_.1} parent=1 // pred_fallthru
      _
    // Predicated region
    $region18: #{_lambda_.1} parent=1 // pred_check
      _
    $region19: #{_lambda_.1} parent=1 // pred_check_branch
      %33 = sbr.rel (0) target = $region21
    $region20: #{_lambda_.1} parent=1 // pred_region
      %35 = vsyncadd [#allocation5], 0
      %s36 = sshll.u32 %s4, 4
      %s37 = int_to_ptr.hbm [resolvable:$true] %s36
      %s38 = sshll.u32 [#allocation4], 4
      %s39 = int_to_ptr.vmem [resolvable:$true] %s38
      %44 = dma.hbm_to_vmem [thread:$0]  %s37, 2048, %s39, [#allocation5], 64, 64, 4
    $region21: #{_lambda_.1} parent=1 // pred_fallthru
      _
    // Predicated region
    $region22: #{_lambda_.1} parent=1 // pred_check
      _
    $region23: #{_lambda_.1} parent=1 // pred_check_branch
      %46 = sbr.rel (0) target = $region25
    $region24: #{_lambda_.1} parent=1 // pred_region
      _
    $region25: #{_lambda_.1} parent=1 // pred_fallthru
      _
    // Predicated region
    $region26: #{_lambda_.1} parent=1 // pred_check
      _
    $region27: #{_lambda_.1} parent=1 // pred_check_branch
      %48 = sbr.rel (0) target = $region29
    $region28: #{_lambda_.1} parent=1 // pred_region
      %50 = dma.done [#allocation3], 6144
    $region29: #{_lambda_.1} parent=1 // pred_fallthru
      _
    // Predicated region
    $region30: #{_lambda_.1} parent=1 // pred_check
      _
    $region31: #{_lambda_.1} parent=1 // pred_check_branch
      %52 = sbr.rel (0) target = $region33
    $region32: #{_lambda_.1} parent=1 // pred_region
      %54 = dma.done [#allocation5], 2048
    $region33: #{_lambda_.1} parent=1 // pred_fallthru
      _
    %v55 = vld [vmem:[%s0] sm:$0xf]
    %v56 = vld [vmem:[%s0 + $0x4] sm:$0xf]
    %s57 = scalar_lea.vmem [#allocation2], 256
    %v58 = vld [vmem:[%s57] sm:$0xf]
    %v59 = vld [vmem:[%s57 + $0x4] sm:$0xf]
    %v60 = vld [vmem:[%s57 + $0x8] sm:$0xf]
    %v61 = vld [vmem:[%s57 + $0xc] sm:$0xf]
    %v62 = vld [vmem:[%s57 + $0x10] sm:$0xf]
    %v63 = vld [vmem:[%s57 + $0x14] sm:$0xf]
    %v64 = vld [vmem:[%s57 + $0x18] sm:$0xf]
    %v65 = vld [vmem:[%s57 + $0x1c] sm:$0xf]
    %v66 = vld [vmem:[%s57 + $0x20] sm:$0xf]
    %v67 = vld [vmem:[%s57 + $0x24] sm:$0xf]
    %v68 = vld [vmem:[%s57 + $0x28] sm:$0xf]
    %v69 = vld [vmem:[%s57 + $0x2c] sm:$0xf]
    %v70 = vld [vmem:[%s57 + $0x30] sm:$0xf]
    %v71 = vld [vmem:[%s57 + $0x34] sm:$0xf]
    %v72 = vld [vmem:[%s57 + $0x38] sm:$0xf]
    %v73 = vld [vmem:[%s57 + $0x3c] sm:$0xf]
    %v74 = vld [vmem:[%s3 + $0x4] sm:$0x1]
    %v75 = vperm.slane %v74, 0
    %v78 = vunpack.c.l.b16 %v55
    %v79 = vunpack.c.l.b16 %v56
    %v80 = vpack.c.b16 %v79, %v78
    %v98 = vunpack.c.l.b16 %v58
    %v99 = vunpack.c.l.b16 %v59
    %v100 = vunpack.c.l.b16 %v60
    %v101 = vunpack.c.l.b16 %v61
    %v102 = vunpack.c.l.b16 %v62
    %v103 = vunpack.c.l.b16 %v63
    %v104 = vunpack.c.l.b16 %v64
    %v105 = vunpack.c.l.b16 %v65
    %v106 = vunpack.c.l.b16 %v66
    %v107 = vunpack.c.l.b16 %v67
    %v108 = vunpack.c.l.b16 %v68
    %v109 = vunpack.c.l.b16 %v69
    %v110 = vunpack.c.l.b16 %v70
    %v111 = vunpack.c.l.b16 %v71
    %v112 = vunpack.c.l.b16 %v72
    %v113 = vunpack.c.l.b16 %v73
    %v114 = vpack.c.b16 %v99, %v98
    %v115 = vpack.c.b16 %v101, %v100
    %v116 = vpack.c.b16 %v103, %v102
    %v117 = vpack.c.b16 %v105, %v104
    %v118 = vpack.c.b16 %v107, %v106
    %v119 = vpack.c.b16 %v109, %v108
    %v120 = vpack.c.b16 %v111, %v110
    %v121 = vpack.c.b16 %v113, %v112
    %130 = vmatpush.bf16.msra.mxu0 %v121
    %131 = vmatpush.bf16.msra.mxu0 %v120
    %132 = vmatpush.bf16.msra.mxu0 %v119
    %133 = vmatpush.bf16.msra.mxu0 %v118
    %134 = vmatpush.bf16.msra.mxu0 %v117
    %135 = vmatpush.bf16.msra.mxu0 %v116
    %136 = vmatpush.bf16.msra.mxu0 %v115
    %137 = vmatpush.bf16.msra.mxu0 %v114
    %138 = vmatmul.bf16.gmra.mxu0 %v80
    %v139 = vpop.f32.mrf.mxu0
    %v140 = vadd.f32 %v75, %v139
    %v141 = vpop.f32.mrf.mxu0
    %v142 = vadd.f32 %v75, %v141
    %143 = vdwg.mxu0
    %v144 = vld [vmem:[#allocation2] sm:$0xf]
    %v145 = vld [vmem:[#allocation2 + $0x4] sm:$0xf]
    %v146 = vld [vmem:[#allocation2 + $0x8] sm:$0xf]
    %v147 = vld [vmem:[#allocation2 + $0xc] sm:$0xf]
    %v148 = vld [vmem:[#allocation2 + $0x10] sm:$0xf]
    %v149 = vld [vmem:[#allocation2 + $0x14] sm:$0xf]
    %v150 = vld [vmem:[#allocation2 + $0x18] sm:$0xf]
    %v151 = vld [vmem:[#allocation2 + $0x1c] sm:$0xf]
    %v152 = vld [vmem:[#allocation2 + $0x20] sm:$0xf]
    %v153 = vld [vmem:[#allocation2 + $0x24] sm:$0xf]
    %v154 = vld [vmem:[#allocation2 + $0x28] sm:$0xf]
    %v155 = vld [vmem:[#allocation2 + $0x2c] sm:$0xf]
    %v156 = vld [vmem:[#allocation2 + $0x30] sm:$0xf]
    %v157 = vld [vmem:[#allocation2 + $0x34] sm:$0xf]
    %v158 = vld [vmem:[#allocation2 + $0x38] sm:$0xf]
    %v159 = vld [vmem:[#allocation2 + $0x3c] sm:$0xf]
    %v160 = vld [vmem:[%s3] sm:$0x1]
    %v161 = vperm.slane %v160, 0
    %v178 = vunpack.c.l.b16 %v144
    %v179 = vunpack.c.l.b16 %v145
    %v180 = vunpack.c.l.b16 %v146
    %v181 = vunpack.c.l.b16 %v147
    %v182 = vunpack.c.l.b16 %v148
    %v183 = vunpack.c.l.b16 %v149
    %v184 = vunpack.c.l.b16 %v150
    %v185 = vunpack.c.l.b16 %v151
    %v186 = vunpack.c.l.b16 %v152
    %v187 = vunpack.c.l.b16 %v153
    %v188 = vunpack.c.l.b16 %v154
    %v189 = vunpack.c.l.b16 %v155
    %v190 = vunpack.c.l.b16 %v156
    %v191 = vunpack.c.l.b16 %v157
    %v192 = vunpack.c.l.b16 %v158
    %v193 = vunpack.c.l.b16 %v159
    %v194 = vpack.c.b16 %v179, %v178
    %v195 = vpack.c.b16 %v181, %v180
    %v196 = vpack.c.b16 %v183, %v182
    %v197 = vpack.c.b16 %v185, %v184
    %v198 = vpack.c.b16 %v187, %v186
    %v199 = vpack.c.b16 %v189, %v188
    %v200 = vpack.c.b16 %v191, %v190
    %v201 = vpack.c.b16 %v193, %v192
    %210 = vmatpush.bf16.msra.mxu0 %v201
    %211 = vmatpush.bf16.msra.mxu0 %v200
    %212 = vmatpush.bf16.msra.mxu0 %v199
    %213 = vmatpush.bf16.msra.mxu0 %v198
    %214 = vmatpush.bf16.msra.mxu0 %v197
    %215 = vmatpush.bf16.msra.mxu0 %v196
    %216 = vmatpush.bf16.msra.mxu0 %v195
    %217 = vmatpush.bf16.msra.mxu0 %v194
    %218 = vmatmul.bf16.gmra.mxu0 %v80
    %v219 = vpop.f32.mrf.mxu0
    %v220 = vadd.f32 %v161, %v219
    %v221 = vpop.f32.mrf.mxu0
    %v222 = vadd.f32 %v161, %v221
    %223 = vdwg.mxu0
    %v224 = vmul.f32 %v220, 0.01
    %v225 = vmul.f32 %v222, 0.01
    %v226 = vmax.f32 %v220, %v224
    %v227 = vmax.f32 %v222, %v225
    %s228 = scalar_lea.vmem [#allocation2], 64
    %v229 = vld [vmem:[%s228] sm:$0xf]
    %v230 = vld [vmem:[%s228 + $0x4] sm:$0xf]
    %v231 = vld [vmem:[%s228 + $0x8] sm:$0xf]
    %v232 = vld [vmem:[%s228 + $0xc] sm:$0xf]
    %v233 = vld [vmem:[%s228 + $0x10] sm:$0xf]
    %v234 = vld [vmem:[%s228 + $0x14] sm:$0xf]
    %v235 = vld [vmem:[%s228 + $0x18] sm:$0xf]
    %v236 = vld [vmem:[%s228 + $0x1c] sm:$0xf]
    %v237 = vld [vmem:[%s228 + $0x20] sm:$0xf]
    %v238 = vld [vmem:[%s228 + $0x24] sm:$0xf]
    %v239 = vld [vmem:[%s228 + $0x28] sm:$0xf]
    %v240 = vld [vmem:[%s228 + $0x2c] sm:$0xf]
    %v241 = vld [vmem:[%s228 + $0x30] sm:$0xf]
    %v242 = vld [vmem:[%s228 + $0x34] sm:$0xf]
    %v243 = vld [vmem:[%s228 + $0x38] sm:$0xf]
    %v244 = vld [vmem:[%s228 + $0x3c] sm:$0xf]
    %v245 = vpack.c.bf16 %v227, %v226
    %v246 = vld [vmem:[%s3 + $0x1] sm:$0x1]
    %v247 = vperm.slane %v246, 0
    %v264 = vunpack.c.l.b16 %v229
    %v265 = vunpack.c.l.b16 %v230
    %v266 = vunpack.c.l.b16 %v231
    %v267 = vunpack.c.l.b16 %v232
    %v268 = vunpack.c.l.b16 %v233
    %v269 = vunpack.c.l.b16 %v234
    %v270 = vunpack.c.l.b16 %v235
    %v271 = vunpack.c.l.b16 %v236
    %v272 = vunpack.c.l.b16 %v237
    %v273 = vunpack.c.l.b16 %v238
    %v274 = vunpack.c.l.b16 %v239
    %v275 = vunpack.c.l.b16 %v240
    %v276 = vunpack.c.l.b16 %v241
    %v277 = vunpack.c.l.b16 %v242
    %v278 = vunpack.c.l.b16 %v243
    %v279 = vunpack.c.l.b16 %v244
    %v280 = vpack.c.b16 %v265, %v264
    %v281 = vpack.c.b16 %v267, %v266
    %v282 = vpack.c.b16 %v269, %v268
    %v283 = vpack.c.b16 %v271, %v270
    %v284 = vpack.c.b16 %v273, %v272
    %v285 = vpack.c.b16 %v275, %v274
    %v286 = vpack.c.b16 %v277, %v276
    %v287 = vpack.c.b16 %v279, %v278
    %296 = vmatpush.bf16.msra.mxu0 %v287
    %297 = vmatpush.bf16.msra.mxu0 %v286
    %298 = vmatpush.bf16.msra.mxu0 %v285
    %299 = vmatpush.bf16.msra.mxu0 %v284
    %300 = vmatpush.bf16.msra.mxu0 %v283
    %301 = vmatpush.bf16.msra.mxu0 %v282
    %302 = vmatpush.bf16.msra.mxu0 %v281
    %303 = vmatpush.bf16.msra.mxu0 %v280
    %304 = vmatmul.bf16.gmra.mxu0 %v245
    %v305 = vpop.f32.mrf.mxu0
    %v306 = vadd.f32 %v247, %v305
    %v307 = vpop.f32.mrf.mxu0
    %v308 = vadd.f32 %v247, %v307
    %309 = vdwg.mxu0
    %v310 = vmul.f32 %v306, 0.01
    %v311 = vmul.f32 %v308, 0.01
    %v312 = vmax.f32 %v306, %v310
    %v313 = vmax.f32 %v308, %v311
    %v314 = vmul.f32 %v140, 0.01
    %v315 = vmul.f32 %v142, 0.01
    %v316 = vmax.f32 %v140, %v314
    %v317 = vmax.f32 %v142, %v315
    %v318 = vadd.f32 %v312, %v316
    %v319 = vadd.f32 %v313, %v317
    %s320 = scalar_lea.vmem [#allocation2], 320
    %v321 = vld [vmem:[%s320] sm:$0xf]
    %v322 = vld [vmem:[%s320 + $0x4] sm:$0xf]
    %v323 = vld [vmem:[%s320 + $0x8] sm:$0xf]
    %v324 = vld [vmem:[%s320 + $0xc] sm:$0xf]
    %v325 = vld [vmem:[%s320 + $0x10] sm:$0xf]
    %v326 = vld [vmem:[%s320 + $0x14] sm:$0xf]
    %v327 = vld [vmem:[%s320 + $0x18] sm:$0xf]
    %v328 = vld [vmem:[%s320 + $0x1c] sm:$0xf]
    %v329 = vld [vmem:[%s320 + $0x20] sm:$0xf]
    %v330 = vld [vmem:[%s320 + $0x24] sm:$0xf]
    %v331 = vld [vmem:[%s320 + $0x28] sm:$0xf]
    %v332 = vld [vmem:[%s320 + $0x2c] sm:$0xf]
    %v333 = vld [vmem:[%s320 + $0x30] sm:$0xf]
    %v334 = vld [vmem:[%s320 + $0x34] sm:$0xf]
    %v335 = vld [vmem:[%s320 + $0x38] sm:$0xf]
    %v336 = vld [vmem:[%s320 + $0x3c] sm:$0xf]
    %v337 = vpack.c.bf16 %v319, %v318
    %v338 = vld [vmem:[%s3 + $0x5] sm:$0x1]
    %v339 = vperm.slane %v338, 0
    %v356 = vunpack.c.l.b16 %v321
    %v357 = vunpack.c.l.b16 %v322
    %v358 = vunpack.c.l.b16 %v323
    %v359 = vunpack.c.l.b16 %v324
    %v360 = vunpack.c.l.b16 %v325
    %v361 = vunpack.c.l.b16 %v326
    %v362 = vunpack.c.l.b16 %v327
    %v363 = vunpack.c.l.b16 %v328
    %v364 = vunpack.c.l.b16 %v329
    %v365 = vunpack.c.l.b16 %v330
    %v366 = vunpack.c.l.b16 %v331
    %v367 = vunpack.c.l.b16 %v332
    %v368 = vunpack.c.l.b16 %v333
    %v369 = vunpack.c.l.b16 %v334
    %v370 = vunpack.c.l.b16 %v335
    %v371 = vunpack.c.l.b16 %v336
    %v372 = vpack.c.b16 %v357, %v356
    %v373 = vpack.c.b16 %v359, %v358
    %v374 = vpack.c.b16 %v361, %v360
    %v375 = vpack.c.b16 %v363, %v362
    %v376 = vpack.c.b16 %v365, %v364
    %v377 = vpack.c.b16 %v367, %v366
    %v378 = vpack.c.b16 %v369, %v368
    %v379 = vpack.c.b16 %v371, %v370
    %388 = vmatpush.bf16.msra.mxu0 %v379
    %389 = vmatpush.bf16.msra.mxu0 %v378
    %390 = vmatpush.bf16.msra.mxu0 %v377
    %391 = vmatpush.bf16.msra.mxu0 %v376
    %392 = vmatpush.bf16.msra.mxu0 %v375
    %393 = vmatpush.bf16.msra.mxu0 %v374
    %394 = vmatpush.bf16.msra.mxu0 %v373
    %395 = vmatpush.bf16.msra.mxu0 %v372
    %396 = vmatmul.bf16.gmra.mxu0 %v337
    %v397 = vpop.f32.mrf.mxu0
    %v398 = vadd.f32 %v339, %v397
    %v399 = vpop.f32.mrf.mxu0
    %v400 = vadd.f32 %v339, %v399
    %401 = vdwg.mxu0
    %s402 = scalar_lea.vmem [#allocation2], 128
    %v403 = vld [vmem:[%s402] sm:$0xf]
    %v404 = vld [vmem:[%s402 + $0x4] sm:$0xf]
    %v405 = vld [vmem:[%s402 + $0x8] sm:$0xf]
    %v406 = vld [vmem:[%s402 + $0xc] sm:$0xf]
    %v407 = vld [vmem:[%s402 + $0x10] sm:$0xf]
    %v408 = vld [vmem:[%s402 + $0x14] sm:$0xf]
    %v409 = vld [vmem:[%s402 + $0x18] sm:$0xf]
    %v410 = vld [vmem:[%s402 + $0x1c] sm:$0xf]
    %v411 = vld [vmem:[%s402 + $0x20] sm:$0xf]
    %v412 = vld [vmem:[%s402 + $0x24] sm:$0xf]
    %v413 = vld [vmem:[%s402 + $0x28] sm:$0xf]
    %v414 = vld [vmem:[%s402 + $0x2c] sm:$0xf]
    %v415 = vld [vmem:[%s402 + $0x30] sm:$0xf]
    %v416 = vld [vmem:[%s402 + $0x34] sm:$0xf]
    %v417 = vld [vmem:[%s402 + $0x38] sm:$0xf]
    %v418 = vld [vmem:[%s402 + $0x3c] sm:$0xf]
    %v419 = vld [vmem:[%s3 + $0x2] sm:$0x1]
    %v420 = vperm.slane %v419, 0
    %v437 = vunpack.c.l.b16 %v403
    %v438 = vunpack.c.l.b16 %v404
    %v439 = vunpack.c.l.b16 %v405
    %v440 = vunpack.c.l.b16 %v406
    %v441 = vunpack.c.l.b16 %v407
    %v442 = vunpack.c.l.b16 %v408
    %v443 = vunpack.c.l.b16 %v409
    %v444 = vunpack.c.l.b16 %v410
    %v445 = vunpack.c.l.b16 %v411
    %v446 = vunpack.c.l.b16 %v412
    %v447 = vunpack.c.l.b16 %v413
    %v448 = vunpack.c.l.b16 %v414
    %v449 = vunpack.c.l.b16 %v415
    %v450 = vunpack.c.l.b16 %v416
    %v451 = vunpack.c.l.b16 %v417
    %v452 = vunpack.c.l.b16 %v418
    %v453 = vpack.c.b16 %v438, %v437
    %v454 = vpack.c.b16 %v440, %v439
    %v455 = vpack.c.b16 %v442, %v441
    %v456 = vpack.c.b16 %v444, %v443
    %v457 = vpack.c.b16 %v446, %v445
    %v458 = vpack.c.b16 %v448, %v447
    %v459 = vpack.c.b16 %v450, %v449
    %v460 = vpack.c.b16 %v452, %v451
    %469 = vmatpush.bf16.msra.mxu0 %v460
    %470 = vmatpush.bf16.msra.mxu0 %v459
    %471 = vmatpush.bf16.msra.mxu0 %v458
    %472 = vmatpush.bf16.msra.mxu0 %v457
    %473 = vmatpush.bf16.msra.mxu0 %v456
    %474 = vmatpush.bf16.msra.mxu0 %v455
    %475 = vmatpush.bf16.msra.mxu0 %v454
    %476 = vmatpush.bf16.msra.mxu0 %v453
    %477 = vmatmul.bf16.gmra.mxu0 %v337
    %v478 = vpop.f32.mrf.mxu0
    %v479 = vadd.f32 %v420, %v478
    %v480 = vpop.f32.mrf.mxu0
    %v481 = vadd.f32 %v420, %v480
    %482 = vdwg.mxu0
    %v483 = vmul.f32 %v479, 0.01
    %v484 = vmul.f32 %v481, 0.01
    %v485 = vmax.f32 %v479, %v483
    %v486 = vmax.f32 %v481, %v484
    %s487 = scalar_lea.vmem [#allocation2], 192
    %v488 = vld [vmem:[%s487] sm:$0xf]
    %v489 = vld [vmem:[%s487 + $0x4] sm:$0xf]
    %v490 = vld [vmem:[%s487 + $0x8] sm:$0xf]
    %v491 = vld [vmem:[%s487 + $0xc] sm:$0xf]
    %v492 = vld [vmem:[%s487 + $0x10] sm:$0xf]
    %v493 = vld [vmem:[%s487 + $0x14] sm:$0xf]
    %v494 = vld [vmem:[%s487 + $0x18] sm:$0xf]
    %v495 = vld [vmem:[%s487 + $0x1c] sm:$0xf]
    %v496 = vld [vmem:[%s487 + $0x20] sm:$0xf]
    %v497 = vld [vmem:[%s487 + $0x24] sm:$0xf]
    %v498 = vld [vmem:[%s487 + $0x28] sm:$0xf]
    %v499 = vld [vmem:[%s487 + $0x2c] sm:$0xf]
    %v500 = vld [vmem:[%s487 + $0x30] sm:$0xf]
    %v501 = vld [vmem:[%s487 + $0x34] sm:$0xf]
    %v502 = vld [vmem:[%s487 + $0x38] sm:$0xf]
    %v503 = vld [vmem:[%s487 + $0x3c] sm:$0xf]
    %v504 = vpack.c.bf16 %v486, %v485
    %v505 = vld [vmem:[%s3 + $0x3] sm:$0x1]
    %v506 = vperm.slane %v505, 0
    %v523 = vunpack.c.l.b16 %v488
    %v524 = vunpack.c.l.b16 %v489
    %v525 = vunpack.c.l.b16 %v490
    %v526 = vunpack.c.l.b16 %v491
    %v527 = vunpack.c.l.b16 %v492
    %v528 = vunpack.c.l.b16 %v493
    %v529 = vunpack.c.l.b16 %v494
    %v530 = vunpack.c.l.b16 %v495
    %v531 = vunpack.c.l.b16 %v496
    %v532 = vunpack.c.l.b16 %v497
    %v533 = vunpack.c.l.b16 %v498
    %v534 = vunpack.c.l.b16 %v499
    %v535 = vunpack.c.l.b16 %v500
    %v536 = vunpack.c.l.b16 %v501
    %v537 = vunpack.c.l.b16 %v502
    %v538 = vunpack.c.l.b16 %v503
    %v539 = vpack.c.b16 %v524, %v523
    %v540 = vpack.c.b16 %v526, %v525
    %v541 = vpack.c.b16 %v528, %v527
    %v542 = vpack.c.b16 %v530, %v529
    %v543 = vpack.c.b16 %v532, %v531
    %v544 = vpack.c.b16 %v534, %v533
    %v545 = vpack.c.b16 %v536, %v535
    %v546 = vpack.c.b16 %v538, %v537
    %555 = vmatpush.bf16.msra.mxu0 %v546
    %556 = vmatpush.bf16.msra.mxu0 %v545
    %557 = vmatpush.bf16.msra.mxu0 %v544
    %558 = vmatpush.bf16.msra.mxu0 %v543
    %559 = vmatpush.bf16.msra.mxu0 %v542
    %560 = vmatpush.bf16.msra.mxu0 %v541
    %561 = vmatpush.bf16.msra.mxu0 %v540
    %562 = vmatpush.bf16.msra.mxu0 %v539
    %563 = vmatmul.bf16.gmra.mxu0 %v504
    %v564 = vpop.f32.mrf.mxu0
    %v565 = vadd.f32 %v506, %v564
    %v566 = vpop.f32.mrf.mxu0
    %v567 = vadd.f32 %v506, %v566
    %568 = vdwg.mxu0
    %v569 = vmul.f32 %v565, 0.01
    %v570 = vmul.f32 %v567, 0.01
    %v571 = vmax.f32 %v565, %v569
    %v572 = vmax.f32 %v567, %v570
    %v573 = vmul.f32 %v398, 0.01
    %v574 = vmul.f32 %v400, 0.01
    %v575 = vmax.f32 %v398, %v573
    %v576 = vmax.f32 %v400, %v574
    %v577 = vadd.f32 %v571, %v575
    %v578 = vadd.f32 %v572, %v576
    %v579 = vpack.c.bf16 %v577, %v577
    %v580 = vpack.c.bf16 %v578, %v578
    %v581 = vld [vmem:[%s1] sm:$0xf]
    %v582 = vld [vmem:[%s1 + $0x4] sm:$0xf]
    %v585 = vunpack.c.l.b16 %v579
    %v586 = vunpack.c.l.b16 %v580
    %v587 = vpack.c.b16 %v586, %v585
    %v591 = vunpack.c.l.b16 %v581
    %v592 = vunpack.c.l.b16 %v582
    %v593 = vpack.c.b16 %v592, %v591
    %v595 = vld [vmem:[#allocation4] sm:$0xf]
    %v596 = vld [vmem:[#allocation4 + $0x4] sm:$0xf]
    %v597 = vld [vmem:[#allocation4 + $0x8] sm:$0xf]
    %v598 = vld [vmem:[#allocation4 + $0xc] sm:$0xf]
    %v599 = vld [vmem:[#allocation4 + $0x10] sm:$0xf]
    %v600 = vld [vmem:[#allocation4 + $0x14] sm:$0xf]
    %v601 = vld [vmem:[#allocation4 + $0x18] sm:$0xf]
    %v602 = vld [vmem:[#allocation4 + $0x1c] sm:$0xf]
    %v603 = vld [vmem:[#allocation4 + $0x20] sm:$0xf]
    %v604 = vld [vmem:[#allocation4 + $0x24] sm:$0xf]
    %v605 = vld [vmem:[#allocation4 + $0x28] sm:$0xf]
    %v606 = vld [vmem:[#allocation4 + $0x2c] sm:$0xf]
    %v607 = vld [vmem:[#allocation4 + $0x30] sm:$0xf]
    %v608 = vld [vmem:[#allocation4 + $0x34] sm:$0xf]
    %v609 = vld [vmem:[#allocation4 + $0x38] sm:$0xf]
    %v610 = vld [vmem:[#allocation4 + $0x3c] sm:$0xf]
    %v611 = vld [vmem:[#allocation4 + $0x40] sm:$0xf]
    %v612 = vld [vmem:[#allocation4 + $0x44] sm:$0xf]
    %v613 = vld [vmem:[#allocation4 + $0x48] sm:$0xf]
    %v614 = vld [vmem:[#allocation4 + $0x4c] sm:$0xf]
    %v615 = vld [vmem:[#allocation4 + $0x50] sm:$0xf]
    %v616 = vld [vmem:[#allocation4 + $0x54] sm:$0xf]
    %v617 = vld [vmem:[#allocation4 + $0x58] sm:$0xf]
    %v618 = vld [vmem:[#allocation4 + $0x5c] sm:$0xf]
    %v619 = vld [vmem:[#allocation4 + $0x60] sm:$0xf]
    %v620 = vld [vmem:[#allocation4 + $0x64] sm:$0xf]
    %v621 = vld [vmem:[#allocation4 + $0x68] sm:$0xf]
    %v622 = vld [vmem:[#allocation4 + $0x6c] sm:$0xf]
    %v623 = vld [vmem:[#allocation4 + $0x70] sm:$0xf]
    %v624 = vld [vmem:[#allocation4 + $0x74] sm:$0xf]
    %v625 = vld [vmem:[#allocation4 + $0x78] sm:$0xf]
    %v626 = vld [vmem:[#allocation4 + $0x7c] sm:$0xf]
    %v627 = vld [vmem:[%s5] sm:$0x1]
    %v629 = vperm.slane %v627, 0
    %v663 = vunpack.c.l.b16 %v595
    %v664 = vunpack.c.l.b16 %v596
    %v665 = vunpack.c.l.b16 %v597
    %v666 = vunpack.c.l.b16 %v598
    %v667 = vunpack.c.l.b16 %v599
    %v668 = vunpack.c.l.b16 %v600
    %v669 = vunpack.c.l.b16 %v601
    %v670 = vunpack.c.l.b16 %v602
    %v671 = vunpack.c.l.b16 %v603
    %v672 = vunpack.c.l.b16 %v604
    %v673 = vunpack.c.l.b16 %v605
    %v674 = vunpack.c.l.b16 %v606
    %v675 = vunpack.c.l.b16 %v607
    %v676 = vunpack.c.l.b16 %v608
    %v677 = vunpack.c.l.b16 %v609
    %v678 = vunpack.c.l.b16 %v610
    %v679 = vunpack.c.l.b16 %v611
    %v680 = vunpack.c.l.b16 %v612
    %v681 = vunpack.c.l.b16 %v613
    %v682 = vunpack.c.l.b16 %v614
    %v683 = vunpack.c.l.b16 %v615
    %v684 = vunpack.c.l.b16 %v616
    %v685 = vunpack.c.l.b16 %v617
    %v686 = vunpack.c.l.b16 %v618
    %v687 = vunpack.c.l.b16 %v619
    %v688 = vunpack.c.l.b16 %v620
    %v689 = vunpack.c.l.b16 %v621
    %v690 = vunpack.c.l.b16 %v622
    %v691 = vunpack.c.l.b16 %v623
    %v692 = vunpack.c.l.b16 %v624
    %v693 = vunpack.c.l.b16 %v625
    %v694 = vunpack.c.l.b16 %v626
    %v695 = vpack.c.b16 %v664, %v663
    %v696 = vpack.c.b16 %v666, %v665
    %v697 = vpack.c.b16 %v668, %v667
    %v698 = vpack.c.b16 %v670, %v669
    %v699 = vpack.c.b16 %v672, %v671
    %v700 = vpack.c.b16 %v674, %v673
    %v701 = vpack.c.b16 %v676, %v675
    %v702 = vpack.c.b16 %v678, %v677
    %v703 = vpack.c.b16 %v680, %v679
    %v704 = vpack.c.b16 %v682, %v681
    %v705 = vpack.c.b16 %v684, %v683
    %v706 = vpack.c.b16 %v686, %v685
    %v707 = vpack.c.b16 %v688, %v687
    %v708 = vpack.c.b16 %v690, %v689
    %v709 = vpack.c.b16 %v692, %v691
    %v710 = vpack.c.b16 %v694, %v693
    %727 = vmatpush.bf16.msra.mxu0 %v702
    %728 = vmatpush.bf16.msra.mxu0 %v701
    %729 = vmatpush.bf16.msra.mxu0 %v700
    %730 = vmatpush.bf16.msra.mxu0 %v699
    %731 = vmatpush.bf16.msra.mxu0 %v698
    %732 = vmatpush.bf16.msra.mxu0 %v697
    %733 = vmatpush.bf16.msra.mxu0 %v696
    %734 = vmatpush.bf16.msra.mxu0 %v695
    %735 = vmatmul.bf16.gmra.mxu0 %v587
    %v736 = vpop.f32.mrf.mxu0
    %v737 = vadd.f32 %v629, %v736
    %v738 = vpop.f32.mrf.mxu0
    %v739 = vadd.f32 %v629, %v738
    %740 = vdwg.mxu0
    %741 = vmatpush.bf16.msra.mxu0 %v710
    %742 = vmatpush.bf16.msra.mxu0 %v709
    %743 = vmatpush.bf16.msra.mxu0 %v708
    %744 = vmatpush.bf16.msra.mxu0 %v707
    %745 = vmatpush.bf16.msra.mxu0 %v706
    %746 = vmatpush.bf16.msra.mxu0 %v705
    %747 = vmatpush.bf16.msra.mxu0 %v704
    %748 = vmatpush.bf16.msra.mxu0 %v703
    %749 = vmatmul.bf16.gmra.mxu0 %v593
    %v750 = vpop.f32.mrf.mxu0
    %v751 = vadd.f32 %v737, %v750
    %v752 = vpop.f32.mrf.mxu0
    %v753 = vadd.f32 %v739, %v752
    %754 = vdwg.mxu0
    %755 = vst [vmem:[%s6] sm:$0xff] %v751
    %756 = vst [vmem:[%s6 + $0x8] sm:$0xff] %v753
    // Predicated region
    $region34: #{_lambda_.1} parent=1 // pred_check
      _
    $region35: #{_lambda_.1} parent=1 // pred_check_branch
      %758 = sbr.rel (0) target = $region37
    $region36: #{_lambda_.1} parent=1 // pred_region
      _
    $region37: #{_lambda_.1} parent=1 // pred_fallthru
      _
    // Predicated region
    $region38: #{_lambda_.1} parent=1 // pred_check
      _
    $region39: #{_lambda_.1} parent=1 // pred_check_branch
      %760 = sbr.rel (0) target = $region41
    $region40: #{_lambda_.1} parent=1 // pred_region
      _
    $region41: #{_lambda_.1} parent=1 // pred_fallthru
      _
    %761 = vsyncpa [#allocation3], 1
    %762 = vsyncpa [#allocation5], 1

</llo_original>
